<compile_context>
chip_gen: v7x
topology: tpu7x:2x2x1
jax: 0.10.0
libtpu: 0.0.40
codegen_flags: <defaults>
</compile_context>

<pallas_src>
import functools
import math

import jax
import jax.numpy as jnp
from jax import lax
from jax.experimental import pallas as pl
from jax.experimental.pallas import tpu as pltpu


# ---------------------------------------------------------------------------
# Small helpers: tiling, VMEM budget, single-buffered BlockSpecs
# ---------------------------------------------------------------------------
def _round_up(x, m):
    return ((x + m - 1) // m) * m


def _row_tiling(rows):
    """(row_tile, padded_rows): tile divides padded_rows, sublane aligned."""
    for t in (512, 256, 128):
        if rows >= t and rows % t == 0:
            return t, rows
    if rows <= 512:
        p = _round_up(rows, 8)
        return p, p
    p = _round_up(rows, 128)
    return 128, p


def _q_tiling(lq):
    """(q_tile, padded_Lq) for the phase-2 query-row axis."""
    for t in (256, 128):
        if lq >= t and lq % t == 0:
            return t, lq
    if lq <= 256:
        p = _round_up(lq, 8)
        return p, p
    p = _round_up(lq, 128)
    return 128, p


def _col_tiling(dout, din, itemsize, budget=8 * 1024 * 1024):
    """Output-column tile for the linear kernel: keep the resident weight block
    under ~8 MiB (matters for D >= 2048, especially on v7x's 64 MiB VMEM)."""
    if din * dout * itemsize <= budget:
        return dout
    for t in (2048, 1024, 512, 256, 128):
        if dout % t == 0 and din * t * itemsize <= budget:
            return t
    return dout


def _vmem_limit(est_bytes):
    """Generation-aware scoped-VMEM limit (~96 MiB on v5e/v6e, ~48 MiB on v7x)."""
    try:
        cap = int(getattr(pltpu.get_tpu_info(), "vmem_capacity_bytes",
                          64 * 1024 * 1024))
    except Exception:
        cap = 64 * 1024 * 1024
    budget = cap * 3 // 4                      # headroom for compiler scratch
    want = max(int(1.5 * est_bytes), 16 * 1024 * 1024)
    return int(min(want, budget))


@functools.lru_cache(maxsize=None)
def _single_buffer_supported():
    """Probe once whether pipeline_mode=pl.Buffered(1) lowers on this runtime."""
    if not hasattr(pl, "Buffered"):
        return False
    try:
        spec = pl.BlockSpec((8, 128), lambda i: (0, 0),
                            pipeline_mode=pl.Buffered(1))

        def k(x_ref, o_ref):
            o_ref[...] = x_ref[...] + 1.0

        pl.pallas_call(
            k,
            out_shape=jax.ShapeDtypeStruct((16, 128), jnp.float32),
            grid=(2,),
            in_specs=[spec],
            out_specs=pl.BlockSpec((8, 128), lambda i: (i, 0)),
        )(jnp.zeros((8, 128), jnp.float32))
        return True
    except Exception:
        return False


def _reused_spec(block_shape, index_map):
    """BlockSpec for a block reused across many consecutive grid steps:
    single-buffer it to halve its VMEM footprint (exposed DMA is amortized)."""
    if _single_buffer_supported():
        return pl.BlockSpec(block_shape, index_map, pipeline_mode=pl.Buffered(1))
    return pl.BlockSpec(block_shape, index_map)


# ---------------------------------------------------------------------------
# Kernels
# ---------------------------------------------------------------------------
def _linear_kernel(x_ref, w_ref, b_ref, o_ref):
    """One (row, col) tile of y = x @ W + b.  W is pre-cast to the compute
    dtype in the wrapper; only the per-tile activation is cast here."""
    x = x_ref[...].astype(w_ref.dtype)
    y = jnp.dot(x, w_ref[...], preferred_element_type=jnp.float32)
    y = y + b_ref[...]                               # fp32 bias on fp32 acc
    o_ref[...] = y.astype(o_ref.dtype)


def _attn_kernel(*refs, has_mask, return_attn):
    """Fused Q projection + attention core + final projection for one
    (batch, query-tile) block."""
    n_in = 8 if has_mask else 7
    in_refs, out_refs = refs[:n_in], refs[n_in:]
    xq_ref, wq_ref, bq_ref, k_ref, v_ref, wf_ref, bf_ref = in_refs[:7]
    bias_ref = in_refs[7] if has_mask else None
    out_ref = out_refs[0]
    cdt = wq_ref.dtype                               # MXU compute dtype

    # q = x @ Wq + bq (the 1/sqrt(D) scale is pre-folded into Wq / bq).
    q = jnp.dot(xq_ref[0].astype(cdt), wq_ref[...],
                preferred_element_type=jnp.float32)
    q = (q + bq_ref[...]).astype(cdt)                                # (tq, D)

    # scores = q @ k^T without materializing the transpose (contract last dims).
    scores = lax.dot_general(
        q, k_ref[0], dimension_numbers=(((1,), (1,)), ((), ())),
        preferred_element_type=jnp.float32)                          # (tq, Lk)

    if has_mask:
        scores = scores + bias_ref[0]        # additive -1e18 == masked_fill

    # Numerically stable softmax, fp32 throughout.
    m = jnp.max(scores, axis=-1, keepdims=True)
    e = jnp.exp(scores - m)
    s = jnp.sum(e, axis=-1, keepdims=True)
    attn = e / s

    ctx = jnp.dot(attn.astype(cdt), v_ref[0],
                  preferred_element_type=jnp.float32)                # (tq, D)
    out = jnp.dot(ctx.astype(cdt), wf_ref[...],
                  preferred_element_type=jnp.float32)
    out = out + bf_ref[...]
    out_ref[0] = out.astype(out_ref.dtype)
    if return_attn:
        out_refs[1][0] = attn.astype(out_refs[1].dtype)


# ---------------------------------------------------------------------------
# Phase 1: fused-batch row-tiled (and column-tiled) linear projection
# ---------------------------------------------------------------------------
def _linear(x2d, w, b, *, out_dtype):
    """y = x2d @ w + b.  w is (in, out) pre-cast to the compute dtype, b is
    (1, out) fp32.  Rows are padded to the tile; pad rows are sliced off."""
    R, Din = x2d.shape
    Dout = w.shape[1]
    tr, Rp = _row_tiling(R)
    tc = _col_tiling(Dout, Din, jnp.dtype(w.dtype).itemsize)
    if Rp != R:
        x2d = jnp.pad(x2d, ((0, Rp - R), (0, 0)))
    n_rows, n_cols = Rp // tr, Dout // tc

    x_item = jnp.dtype(x2d.dtype).itemsize
    w_item = jnp.dtype(w.dtype).itemsize
    o_item = jnp.dtype(out_dtype).itemsize

    w_bufs = 1 if n_cols == 1 else 2
    est_vmem = (2 * tr * Din * x_item + w_bufs * Din * tc * w_item
                + 2 * tc * 4 + 2 * tr * tc * o_item + 4 * tr * tc)
    cost = pl.CostEstimate(
        flops=int(2 * Rp * Din * Dout),
        transcendentals=0,
        bytes_accessed=int(Rp * Din * x_item
                           + (n_rows if n_cols > 1 else 1) * Din * Dout * w_item
                           + Dout * 4 + Rp * Dout * o_item))

    w_spec = _reused_spec if n_cols == 1 else pl.BlockSpec
    y = pl.pallas_call(
        _linear_kernel,
        out_shape=jax.ShapeDtypeStruct((Rp, Dout), out_dtype),
        grid_spec=pltpu.PrefetchScalarGridSpec(
            num_scalar_prefetch=0,
            grid=(n_rows, n_cols),
            in_specs=[
                pl.BlockSpec((tr, Din), lambda i, j: (i, 0)),   # x row tile
                w_spec((Din, tc), lambda i, j: (0, j)),         # weights
                w_spec((1, tc), lambda i, j: (0, j)),           # bias (fp32)
            ],
            out_specs=pl.BlockSpec((tr, tc), lambda i, j: (i, j)),
        ),
        compiler_params=pltpu.CompilerParams(
            dimension_semantics=("parallel", "parallel"),
            vmem_limit_bytes=_vmem_limit(est_vmem)),
        cost_estimate=cost,
    )(x2d, w, b)
    return y[:R] if Rp != R else y


# ---------------------------------------------------------------------------
# Full forward
# ---------------------------------------------------------------------------
def external_attention(key, value, query, params, mask=None, *,
                       compute_dtype=None, return_attn=True):
    """key, value: [B, Lk, D]; query: [B, Lq, D]; mask (optional): boolean,
    broadcastable to [B, Lq, Lk], True = masked.  Returns (output, attn|None)."""
    B, Lk, D = key.shape
    Lq = query.shape[1]
    dtype = query.dtype
    if compute_dtype is None:
        compute_dtype = jnp.bfloat16          # MXU-peak default; fp32 accumulate
    cdt = jnp.dtype(compute_dtype)

    inv_sqrt_d = 1.0 / math.sqrt(D)
    # nn.Linear: y = x @ W.T + b -> pre-transpose to (in, out), pre-cast to the
    # compute dtype, fold the 1/sqrt(D) query scale into Wq/bq.  Biases fp32.
    wq = (params["wq"].T * inv_sqrt_d).astype(cdt)
    bq = (params["bq"] * inv_sqrt_d).reshape(1, D).astype(jnp.float32)
    wk = params["wk"].T.astype(cdt)
    bk = params["bk"].reshape(1, D).astype(jnp.float32)
    wv = params["wv"].T.astype(cdt)
    bv = params["bv"].reshape(1, D).astype(jnp.float32)
    wf = params["wf"].T.astype(cdt)
    bf = params["bf"].reshape(1, D).astype(jnp.float32)

    # Phase 1: K / V projections over fused (B*Lk, D) rows, output in compute
    # dtype so phase 2 never re-casts them (and HBM traffic is halved in bf16).
    k3 = _linear(key.reshape(B * Lk, D), wk, bk, out_dtype=cdt).reshape(B, Lk, D)
    v3 = _linear(value.reshape(B * Lk, D), wv, bv, out_dtype=cdt).reshape(B, Lk, D)

    # Phase 2: fused Q projection + attention core + final projection.
    tq, Lqp = _q_tiling(Lq)
    n_q = Lqp // tq
    q_in = query
    if Lqp != Lq:
        q_in = jnp.pad(query, ((0, 0), (0, Lqp - Lq), (0, 0)))

    has_mask = mask is not None
    inputs = [q_in, wq, bq, k3, v3, wf, bf]
    in_specs = [
        pl.BlockSpec((1, tq, D), lambda b, qi: (b, qi, 0)),   # raw query tile
        _reused_spec((D, D), lambda b, qi: (0, 0)),           # Wq (resident)
        _reused_spec((1, D), lambda b, qi: (0, 0)),           # bq
        _reused_spec((1, Lk, D), lambda b, qi: (b, 0, 0)),    # K (reused over qi)
        _reused_spec((1, Lk, D), lambda b, qi: (b, 0, 0)),    # V (reused over qi)
        _reused_spec((D, D), lambda b, qi: (0, 0)),           # Wf (resident)
        _reused_spec((1, D), lambda b, qi: (0, 0)),           # bf
    ]
    if has_mask:
        bias = jnp.where(jnp.broadcast_to(mask, (B, Lq, Lk)),
                         jnp.float32(-1e18), jnp.float32(0.0))
        if Lqp != Lq:
            bias = jnp.pad(bias, ((0, 0), (0, Lqp - Lq), (0, 0)))
        inputs.append(bias)
        in_specs.append(pl.BlockSpec((1, tq, Lk), lambda b, qi: (b, qi, 0)))

    out_shapes = [jax.ShapeDtypeStruct((B, Lqp, D), dtype)]
    out_specs = [pl.BlockSpec((1, tq, D), lambda b, qi: (b, qi, 0))]
    if return_attn:
        # attention map written in the compute dtype (softmax math stays fp32)
        out_shapes.append(jax.ShapeDtypeStruct((B, Lqp, Lk), cdt))
        out_specs.append(pl.BlockSpec((1, tq, Lk), lambda b, qi: (b, qi, 0)))

    in_item = jnp.dtype(dtype).itemsize
    c_item = cdt.itemsize
    est_vmem = (2 * tq * D * in_item                  # query tile (2 buffers)
                + 2 * D * D * c_item + 2 * D * 4      # Wq/Wf + biases (1 buffer)
                + 2 * Lk * D * c_item                 # K, V (1 buffer each)
                + 2 * tq * D * in_item                # output (2 buffers)
                + (2 * tq * Lk * c_item if return_attn else 0)
                + (2 * tq * Lk * 4 if has_mask else 0)
                + 6 * tq * Lk * 4 + 4 * tq * D * 4)   # fp32 scores/softmax/ctx
    cost = pl.CostEstimate(
        flops=int(B * Lqp * (4 * Lk * D + 4 * D * D + 4 * Lk)),
        transcendentals=int(B * Lqp * Lk),
        bytes_accessed=int(2 * B * Lqp * D * in_item + 2 * B * Lk * D * c_item
                           + 2 * D * D * c_item + 4 * D * 4
                           + (B * Lqp * Lk * c_item if return_attn else 0)
                           + (B * Lqp * Lk * 4 if has_mask else 0)))

    results = pl.pallas_call(
        functools.partial(_attn_kernel, has_mask=has_mask,
                          return_attn=return_attn),
        out_shape=tuple(out_shapes),
        grid_spec=pltpu.PrefetchScalarGridSpec(
            num_scalar_prefetch=0,
            grid=(B, n_q),
            in_specs=in_specs,
            out_specs=tuple(out_specs),
        ),
        compiler_params=pltpu.CompilerParams(
            # batch axis "parallel" so a v7x megacore split keeps the per-core
            # K/V-reuse-across-qi pattern; inner q-tile axis "arbitrary".
            dimension_semantics=("parallel", "arbitrary"),
            vmem_limit_bytes=_vmem_limit(est_vmem)),
        cost_estimate=cost,
    )(*inputs)

    if return_attn:
        out, attn = results
    else:
        out = results[0] if isinstance(results, (tuple, list)) else results
        attn = None
    if Lqp != Lq:
        out = out[:, :Lq]
        attn = attn[:, :Lq] if attn is not None else None
    return out, attn


# ---------------------------------------------------------------------------
# Reference / test
# ---------------------------------------------------------------------------
def _init_params(rng, model_dim):
    """Deterministic nn.Linear-style init: U(-1/sqrt(in), 1/sqrt(in))."""
    bound = 1.0 / math.sqrt(model_dim)
    keys = jax.random.split(rng, 8)
    names = ["wq", "bq", "wk", "bk", "wv", "bv", "wf", "bf"]
    p = {}
    for i, name in enumerate(names):
        shape = (model_dim, model_dim) if name.startswith("w") else (model_dim,)
        p[name] = jax.random.uniform(keys[i], shape, jnp.float32,
                                     minval=-bound, maxval=bound)
    return p


def _reference(key, value, query, params, mask=None):
    """Pure-JAX reference of the PyTorch forward."""
    D = key.shape[-1]
    q = query @ params["wq"].T + params["bq"]
    k = key @ params["wk"].T + params["bk"]
    v = value @ params["wv"].T + params["bv"]
    q = q / math.sqrt(D)
    scores = jnp.einsum("bqd,bkd->bqk", q, k)
    if mask is not None:
        scores = jnp.where(mask, jnp.float32(-1e18), scores)
    attn = jax.nn.softmax(scores, axis=-1)
    context = jnp.einsum("bqk,bkd->bqd", attn, v)
    out = context @ params["wf"].T + params["bf"]
    return out, attn


if __name__ == "__main__":
    B, L, D = 2, 8, 32
    rng = jax.random.PRNGKey(0)
    r_k, r_v, r_q, r_p, r_m = jax.random.split(rng, 5)

    key = jax.random.normal(r_k, (B, L, D), jnp.float32)
    value = jax.random.normal(r_v, (B, L, D), jnp.float32)
    query = jax.random.normal(r_q, (B, L, D), jnp.float32)
    params = _init_params(r_p, D)

    # 1) Exact path (fp32 compute) against the pure-JAX reference.
    out32, attn32 = external_attention(key, value, query, params,
                                       compute_dtype=jnp.float32)
    out32 = jax.block_until_ready(out32)
    ref_out, ref_attn = _reference(key, value, query, params)
    assert jnp.allclose(out32, ref_out, atol=1e-4, rtol=1e-4), "fp32 output mismatch"
    assert jnp.allclose(attn32, ref_attn, atol=1e-5, rtol=1e-5), "fp32 attn mismatch"

    # 2) Masked path (fp32 compute).
    mask = jax.random.bernoulli(r_m, 0.25, (B, L, L))
    out_m, attn_m = external_attention(key, value, query, params, mask,
                                       compute_dtype=jnp.float32)
    out_m = jax.block_until_ready(out_m)
    ref_out_m, ref_attn_m = _reference(key, value, query, params, mask)
    assert jnp.allclose(out_m, ref_out_m, atol=1e-4, rtol=1e-4), "masked out mismatch"
    assert jnp.allclose(attn_m, ref_attn_m, atol=1e-5, rtol=1e-5), "masked attn mismatch"

    # 3) Default fast path: bf16 MXU inputs, fp32 accumulate, bf16 attn map.
    out16, attn16 = external_attention(key, value, query, params)
    out16 = jax.block_until_ready(out16)
    attn16 = jax.block_until_ready(attn16)
    assert jnp.allclose(out16.astype(jnp.float32), ref_out,
                        atol=5e-2, rtol=5e-2), "bf16 output mismatch"
    assert jnp.allclose(attn16.astype(jnp.float32), ref_attn,
                        atol=2e-2, rtol=2e-2), "bf16 attn mismatch"

    print("KERNEL_OK")
</pallas_src>

<mosaic_0001>
module attributes {stable_mosaic.version = 11 : i64} {
  func.func @k(%arg0: i32, %arg1: memref<8x128xf32, #tpu.memory_space<vmem>>, %arg2: memref<8x128xf32, #tpu.memory_space<vmem>>) attributes {dimension_semantics = [#tpu.dimension_semantics<arbitrary>], iteration_bounds = array<i64: 2>, scalar_prefetch = 0 : i64, scratch_operands = 0 : i64, tpu.core_type = #tpu.core_type<tc>, window_params = [{pipeline_mode = #tpu.pipeline_mode<synchronous>, transform_indices = @transform_0, window_bounds = array<i64: 8, 128>}, {transform_indices = @transform_1, window_bounds = array<i64: 8, 128>}]} {
    %c0 = arith.constant 0 : index
    %c0_0 = arith.constant 0 : index
    %0 = vector.load %arg1[%c0, %c0_0] : memref<8x128xf32, #tpu.memory_space<vmem>>, vector<8x128xf32>
    %cst = arith.constant 1.000000e+00 : f32
    %1 = vector.broadcast %cst : f32 to vector<8x128xf32>
    %2 = arith.addf %0, %1 : vector<8x128xf32>
    %c0_1 = arith.constant 0 : index
    %c0_2 = arith.constant 0 : index
    %3 = vector.load %arg2[%c0_1, %c0_2] : memref<8x128xf32, #tpu.memory_space<vmem>>, vector<8x128xf32>
    tpu.vector_store %arg2[%c0_1, %c0_2], %2 {strides = array<i32>} : memref<8x128xf32, #tpu.memory_space<vmem>>, vector<8x128xf32>,
    return
  }
  func.func @transform_0(%arg0: i32) -> (i32, i32) {
    %c0_i32 = arith.constant 0 : i32
    %c0_i32_0 = arith.constant 0 : i32
    %c0_i32_1 = arith.constant 0 : i32
    return %c0_i32, %c0_i32_0 : i32, i32
  }
  func.func @transform_1(%arg0: i32) -> (i32, i32) {
    %c0_i32 = arith.constant 0 : i32
    %c0_i32_0 = arith.constant 0 : i32
    return %arg0, %c0_i32 : i32, i32
  }
}

module attributes {stable_mosaic.version = 11 : i64} {
  func.func @_linear_kernel(%arg0: i32, %arg1: i32, %arg2: memref<16x32xf32, #tpu.memory_space<vmem>>, %arg3: memref<32x32xf32, #tpu.memory_space<vmem>>, %arg4: memref<1x32xf32, #tpu.memory_space<vmem>>, %arg5: memref<16x32xf32, #tpu.memory_space<vmem>>) attributes {dimension_semantics = [#tpu.dimension_semantics<parallel>, #tpu.dimension_semantics<parallel>], iteration_bounds = array<i64: 1, 1>, scalar_prefetch = 0 : i64, scratch_operands = 0 : i64, tpu.core_type = #tpu.core_type<tc>, window_params = [{transform_indices = @transform_0, window_bounds = array<i64: 16, 32>}, {transform_indices = @transform_1, window_bounds = array<i64: 32, 32>}, {transform_indices = @transform_2, window_bounds = array<i64: 1, 32>}, {transform_indices = @transform_3, window_bounds = array<i64: 16, 32>}]} {
    %c0 = arith.constant 0 : index
    %c0_0 = arith.constant 0 : index
    %0 = vector.load %arg2[%c0, %c0_0] : memref<16x32xf32, #tpu.memory_space<vmem>>, vector<16x32xf32>
    %c0_1 = arith.constant 0 : index
    %c0_2 = arith.constant 0 : index
    %1 = vector.load %arg3[%c0_1, %c0_2] : memref<32x32xf32, #tpu.memory_space<vmem>>, vector<32x32xf32>
    %cst = arith.constant dense<0.000000e+00> : vector<16x32xf32>
    %2 = tpu.matmul %0, %1, %cst {dimension_numbers = #tpu.dot_dimension_numbers<[1], [0], [0], [1], [0, 0, 1, 1], [], []>} : vector<16x32xf32>, vector<32x32xf32>, vector<16x32xf32> -> vector<16x32xf32>
    %c0_3 = arith.constant 0 : index
    %c0_4 = arith.constant 0 : index
    %3 = vector.load %arg4[%c0_3, %c0_4] : memref<1x32xf32, #tpu.memory_space<vmem>>, vector<1x32xf32>
    %4 = vector.broadcast %3 : vector<1x32xf32> to vector<16x32xf32>
    %5 = arith.addf %2, %4 : vector<16x32xf32>
    %c0_5 = arith.constant 0 : index
    %c0_6 = arith.constant 0 : index
    %6 = vector.load %arg5[%c0_5, %c0_6] : memref<16x32xf32, #tpu.memory_space<vmem>>, vector<16x32xf32>
    tpu.vector_store %arg5[%c0_5, %c0_6], %5 {strides = array<i32>} : memref<16x32xf32, #tpu.memory_space<vmem>>, vector<16x32xf32>,
    return
  }
  func.func @transform_0(%arg0: i32, %arg1: i32) -> (i32, i32) {
    %c0_i32 = arith.constant 0 : i32
    %c0_i32_0 = arith.constant 0 : i32
    return %arg0, %c0_i32 : i32, i32
  }
  func.func @transform_1(%arg0: i32, %arg1: i32) -> (i32, i32) {
    %c0_i32 = arith.constant 0 : i32
    %c0_i32_0 = arith.constant 0 : i32
    return %c0_i32, %arg1 : i32, i32
  }
  func.func @transform_2(%arg0: i32, %arg1: i32) -> (i32, i32) {
    %c0_i32 = arith.constant 0 : i32
    %c0_i32_0 = arith.constant 0 : i32
    return %c0_i32, %arg1 : i32, i32
  }
  func.func @transform_3(%arg0: i32, %arg1: i32) -> (i32, i32) {
    %c0_i32 = arith.constant 0 : i32
    return %arg0, %arg1 : i32, i32
  }
}

</mosaic_0001>

<llo_original>
// kernel: tpu_custom_call.1
$region0: #{tpu_custom_call.1}
  #allocation0 [shape = 'u32[]', space=smem, size = 0x4, offset = 0x4, fixed_abs, tag = 'smem constant byte address 0x4 - core index']
  #allocation1 [shape = 'u32[144,128]{1,0:T(1,128)}', space=vmem, size = 0x12000, scoped, tag = 'internal scratch']
  %s0 = inlined_call_operand.hbm [shape: f32[8,128], index: 0, kind: input, shape index: {}]
  %s1 = inlined_call_operand.hbm [shape: f32[16,128], index: 1, kind: output, shape index: {}]
  %s2 = sld [smem:[#allocation0]]
  $region41: #{tpu_custom_call.1} parent=0
    _
  %s4 = ssub.s32 1, %s2
  %s5 = scalar_select 0, %s4, %s2
  $region1: #{tpu_custom_call.1} parent=0
    #allocation2 [shape = 'u8[4096]{0}', space=vmem, size = 0x1000, scoped, tag = 'input window, operand 0, single buffered']
    #allocation3 [shape = 's32[2]{0}', space=sflag, size = 0x8, scoped, tag = 'scoped memory for tpu_custom_call.1']
    #allocation4 [shape = 's32[2]{0}', space=sflag, size = 0x8, scoped, tag = 'scoped memory for tpu_custom_call.1']
    #allocation5 [shape = 'u8[8192]{0}', space=vmem, size = 0x2000, scoped, tag = 'output window, operand 0']
    %6 = vsyncpa [#allocation3], 0
    %7 = vsyncpa [#allocation4], 0
    %s8 = scalar_lea.sflag [#allocation4], 1
    %9 = vsyncpa %s8, 0
    loop: start=0, step=1, limit=4
    $region2: #{tpu_custom_call.1} parent=1 // loop_pre_header
      _
    $region3: #{tpu_custom_call.1} parent=1 // loop_header
      %s11 = sphi 0, %s15
      %p12 = scmp.ge.s32.totalorder %s11, 4
      %s19 = sphi 0, %s19
      %s21 = sphi 0, %s19
      %s22 = sphi 0, %s21
      %s36 = sphi 0, %s22
      %s42 = sphi 0, %s44
      %s45 = sphi 0, %s42
      %s46 = sphi 0, %s45
      %s62 = sphi 0, %s46
    $region4: #{tpu_custom_call.1} parent=1 // loop_header_branch
      %14 = sbr.rel (%p12) target = $region8
    $region5: #{tpu_custom_call.1} parent=1 // loop_body
      %s16 = ssub.s32 %s11, 1
      %s17 = ssub.s32 %s11, 2
      %s18 = sadd.s32 %s11, 1
      %s20 = sadd.s32 %s19, 1
      %p23 = scmp.eq.s32.totalorder %s11, 1
      %p24 = scmp.ne.s32.totalorder %s19, %s21
      %p25 = scmp.eq.s32.totalorder %s11, 0
      %p26 = por %p24, %p25
      %p27 = scmp.ne.s32.totalorder %s19, %s21
      %p28 = scmp.eq.s32.totalorder %s16, 1
      %p29 = por %p27, %p28
      %p30 = scmp.ne.s32.totalorder %s21, %s22
      %p31 = scmp.eq.s32.totalorder %s16, 0
      %p32 = por %p30, %p31
      %p33 = scmp.ne.s32.totalorder %s21, %s22
      %p34 = scmp.eq.s32.totalorder %s17, 1
      %p35 = por %p33, %p34
      %p37 = scmp.ne.s32.totalorder %s22, %s36
      %p38 = scmp.eq.s32.totalorder %s17, 0
      %p39 = por %p37, %p38
      %s40 = ssub.s32 %s11, %s18
      %p41 = scmp.eq.s32.totalorder %s40, 0
      %s43 = sadd.s32 %s42, 1
      %s44 = scalar_select %p41, %s42, %s43
      %p47 = pneg %p41
      %p48 = scmp.eq.s32.totalorder %s11, 1
      %p49 = por %p47, %p48
      %p50 = scmp.ne.s32.totalorder %s42, %s45
      %p51 = scmp.eq.s32.totalorder %s11, 0
      %p52 = por %p50, %p51
      %p53 = scmp.ne.s32.totalorder %s42, %s45
      %p54 = scmp.eq.s32.totalorder %s16, 1
      %p55 = por %p53, %p54
      %p56 = scmp.ne.s32.totalorder %s45, %s46
      %p57 = scmp.eq.s32.totalorder %s16, 0
      %p58 = por %p56, %p57
      %p59 = scmp.ne.s32.totalorder %s45, %s46
      %p60 = scmp.eq.s32.totalorder %s17, 1
      %p61 = por %p59, %p60
      %p63 = scmp.ne.s32.totalorder %s46, %s62
      %p64 = scmp.eq.s32.totalorder %s17, 0
      %p65 = por %p63, %p64
      %p66 = scmp.le.s32.totalorder 1, %s11
      %p67 = scmp.lt.s32.totalorder %s11, 3
      %p68 = pnand %p66, %p67
      %p69 = pneg %p68
      // Predicated region
      $region9: #{tpu_custom_call.1} parent=5 // pred_check
        _
      $region10: #{tpu_custom_call.1} parent=5 // pred_check_branch
        %71 = sbr.rel (%p68) target = $region12
      $region11: #{tpu_custom_call.1} parent=5 // pred_region
        %s72 = ssub.s32 %s11, 1
        // Predicated region
        $region13: #{tpu_custom_call.1} parent=11 // pred_check
          %p73 = pneg %p32
        $region14: #{tpu_custom_call.1} parent=11 // pred_check_branch
          %75 = sbr.rel (%p73) target = $region16
        $region15: #{tpu_custom_call.1} parent=11 // pred_region
          %s77 = ssub.s32 128, 128
          %78 = vsyncadd [#allocation3], %s77
          %s80 = sshll.u32 [#allocation2], 4
          %s81 = int_to_ptr.vmem [resolvable:$true] %s80
          %83 = dma.hbm_to_vmem [thread:$0]  %s0, 128, %s81, [#allocation3]
        $region16: #{tpu_custom_call.1} parent=11 // pred_fallthru
          _
      $region12: #{tpu_custom_call.1} parent=5 // pred_fallthru
        _
      %p84 = scmp.lt.s32.totalorder %s11, 2
      // Predicated region
      $region17: #{tpu_custom_call.1} parent=5 // pred_check
        %p85 = pneg %p84
      $region18: #{tpu_custom_call.1} parent=5 // pred_check_branch
        %87 = sbr.rel (%p85) target = $region20
      $region19: #{tpu_custom_call.1} parent=5 // pred_region
        _
      $region20: #{tpu_custom_call.1} parent=5 // pred_fallthru
        _
      %p88 = scmp.le.s32.totalorder 1, %s11
      %p89 = scmp.lt.s32.totalorder %s11, 3
      %p90 = pnand %p88, %p89
      %p91 = pneg %p90
      // Predicated region
      $region21: #{tpu_custom_call.1} parent=5 // pred_check
        _
      $region22: #{tpu_custom_call.1} parent=5 // pred_check_branch
        %93 = sbr.rel (%p90) target = $region24
      $region23: #{tpu_custom_call.1} parent=5 // pred_region
        %s94 = ssub.s32 %s11, 1
        // Predicated region
        $region25: #{tpu_custom_call.1} parent=23 // pred_check
          %p95 = pneg %p32
        $region26: #{tpu_custom_call.1} parent=23 // pred_check_branch
          %97 = sbr.rel (%p95) target = $region28
        $region27: #{tpu_custom_call.1} parent=23 // pred_region
          %98 = dma.done [#allocation3], 128
        $region28: #{tpu_custom_call.1} parent=23 // pred_fallthru
          _
        %p99 = pneg %p32
        %p100 = pneg %p29
        %p101 = pneg %p58
        %p102 = pneg %p55
        %s103 = sand.u32 %s45, 1
        %s104 = scalar_lea.sflag [#allocation4], %s103
        %s105 = sand.u32 %s45, 1
        %s106 = smul.addr %s105, 8
        %s107 = scalar_lea.vmem [#allocation5], %s106
        %v108 = vld [vmem:[#allocation2] sm:$0xff]
        %v109 = vadd.f32 %v108, 1.0
        %110 = vst [vmem:[%s107] sm:$0xff] %v109
        %s111 = sand.u32 %s45, 1
        %s112 = scalar_lea.sflag [#allocation4], %s111
        %s113 = sand.u32 %s45, 1
        %s114 = smul.addr %s113, 8
        %s115 = scalar_lea.vmem [#allocation5], %s114
        // Predicated region
        $region29: #{tpu_custom_call.1} parent=23 // pred_check
          %p116 = pneg %p55
        $region30: #{tpu_custom_call.1} parent=23 // pred_check_branch
          %118 = sbr.rel (%p116) target = $region32
        $region31: #{tpu_custom_call.1} parent=23 // pred_region
          %s120 = ssub.s32 128, 128
          %121 = vsyncadd %s112, %s120
          %s122 = smul.addr %s16, 128
          %s123 = scalar_lea.hbm %s1, %s122
          %s125 = sshll.u32 %s115, 4
          %s126 = int_to_ptr.vmem [resolvable:$true] %s125
          %128 = dma.vmem_to_hbm [thread:$0]  %s126, 128, %s123, %s112
        $region32: #{tpu_custom_call.1} parent=23 // pred_fallthru
          _
      $region24: #{tpu_custom_call.1} parent=5 // pred_fallthru
        _
      %p129 = scmp.le.s32.totalorder 2, %s11
      // Predicated region
      $region33: #{tpu_custom_call.1} parent=5 // pred_check
        %p130 = pneg %p129
      $region34: #{tpu_custom_call.1} parent=5 // pred_check_branch
        %132 = sbr.rel (%p130) target = $region36
      $region35: #{tpu_custom_call.1} parent=5 // pred_region
        %s133 = ssub.s32 %s11, 2
        // Predicated region
        $region37: #{tpu_custom_call.1} parent=35 // pred_check
          %p134 = pneg %p61
        $region38: #{tpu_custom_call.1} parent=35 // pred_check_branch
          %136 = sbr.rel (%p134) target = $region40
        $region39: #{tpu_custom_call.1} parent=35 // pred_region
          %s137 = sand.u32 %s46, 1
          %s138 = scalar_lea.sflag [#allocation4], %s137
          %s139 = sand.u32 %s46, 1
          %s140 = smul.addr %s139, 8
          %s141 = scalar_lea.vmem [#allocation5], %s140
          %142 = dma.done %s138, 128
        $region40: #{tpu_custom_call.1} parent=35 // pred_fallthru
          _
      $region36: #{tpu_custom_call.1} parent=5 // pred_fallthru
        _
    $region6: #{tpu_custom_call.1} parent=1 // loop_footer
      %s15 = sadd.s32 1, %s11
    $region7: #{tpu_custom_call.1} parent=1 // loop_footer_branch
      %10 = sbr.rel target = $region3
    $region8: #{tpu_custom_call.1} parent=1 // loop_exit
      _
    %143 = vsyncpa [#allocation3], 1
    %s144 = scalar_lea.sflag [#allocation3], 1
    %145 = vsyncpa %s144, 1
    %146 = vsyncpa [#allocation4], 1
    %s147 = scalar_lea.sflag [#allocation4], 1
    %148 = vsyncpa %s147, 1

// kernel: tpu_custom_call.1
$region0: #{tpu_custom_call.1}
  #allocation0 [shape = 'u32[]', space=smem, size = 0x4, offset = 0x4, fixed_abs, tag = 'smem constant byte address 0x4 - core index']
  #allocation1 [shape = 'u32[144,128]{1,0:T(1,128)}', space=vmem, size = 0x12000, scoped, tag = 'internal scratch']
  %s0 = inlined_call_operand.hbm [shape: f32[16,32], index: 0, kind: input, shape index: {}]
  %s1 = inlined_call_operand.hbm [shape: f32[32,32], index: 1, kind: input, shape index: {}]
  %s2 = inlined_call_operand.vmem [shape: f32[1,32], index: 2, kind: input, shape index: {}]
  %s3 = inlined_call_operand.hbm [shape: f32[16,32], index: 3, kind: output, shape index: {}]
  %s4 = sld [smem:[#allocation0]]
  $region30: #{tpu_custom_call.1} parent=0
    _
  %s6 = ssub.s32 1, %s4
  %s7 = scalar_select 0, %s6, %s4
  $region1: #{tpu_custom_call.1} parent=0
    #allocation2 [shape = 'u8[8192]{0}', space=vmem, size = 0x2000, scoped, tag = 'input window, operand 0, single buffered']
    #allocation3 [shape = 's32[1]{0}', space=sflag, size = 0x4, scoped, tag = 'scoped memory for tpu_custom_call.1']
    #allocation4 [shape = 's32[1]{0}', space=sflag, size = 0x4, scoped, tag = 'scoped memory for tpu_custom_call.1']
    #allocation5 [shape = 'u8[16384]{0}', space=vmem, size = 0x4000, scoped, tag = 'input window, operand 1, single buffered']
    #allocation6 [shape = 's32[1]{0}', space=sflag, size = 0x4, scoped, tag = 'scoped memory for tpu_custom_call.1']
    #allocation7 [shape = 'u8[8192]{0}', space=vmem, size = 0x2000, scoped, tag = 'output window, operand 0, single buffered']
    %8 = vsyncpa [#allocation3], 0
    %9 = vsyncpa [#allocation6], 0
    %10 = vsyncpa [#allocation4], 0
    // Predicated region
    $region2: #{tpu_custom_call.1} parent=1 // pred_check
      _
    $region3: #{tpu_custom_call.1} parent=1 // pred_check_branch
      %12 = sbr.rel (0) target = $region5
    $region4: #{tpu_custom_call.1} parent=1 // pred_region
      %s14 = ssub.s32 256, 256
      %15 = vsyncadd [#allocation3], %s14
      %s16 = sshll.u32 [#allocation2], 4
      %s17 = int_to_ptr.vmem [resolvable:$true] %s16
      %22 = dma.hbm_to_vmem [thread:$0]  %s0, 256, %s17, [#allocation3], 128, 128, 8
    $region5: #{tpu_custom_call.1} parent=1 // pred_fallthru
      _
    // Predicated region
    $region6: #{tpu_custom_call.1} parent=1 // pred_check
      _
    $region7: #{tpu_custom_call.1} parent=1 // pred_check_branch
      %24 = sbr.rel (0) target = $region9
    $region8: #{tpu_custom_call.1} parent=1 // pred_region
      %s26 = ssub.s32 512, 512
      %27 = vsyncadd [#allocation6], %s26
      %s28 = sshll.u32 [#allocation5], 4
      %s29 = int_to_ptr.vmem [resolvable:$true] %s28
      %34 = dma.hbm_to_vmem [thread:$0]  %s1, 512, %s29, [#allocation6], 128, 128, 8
    $region9: #{tpu_custom_call.1} parent=1 // pred_fallthru
      _
    // Predicated region
    $region10: #{tpu_custom_call.1} parent=1 // pred_check
      _
    $region11: #{tpu_custom_call.1} parent=1 // pred_check_branch
      %36 = sbr.rel (0) target = $region13
    $region12: #{tpu_custom_call.1} parent=1 // pred_region
      _
    $region13: #{tpu_custom_call.1} parent=1 // pred_fallthru
      _
    // Predicated region
    $region14: #{tpu_custom_call.1} parent=1 // pred_check
      _
    $region15: #{tpu_custom_call.1} parent=1 // pred_check_branch
      %38 = sbr.rel (0) target = $region17
    $region16: #{tpu_custom_call.1} parent=1 // pred_region
      %39 = dma.done [#allocation3], 256
    $region17: #{tpu_custom_call.1} parent=1 // pred_fallthru
      _
    // Predicated region
    $region18: #{tpu_custom_call.1} parent=1 // pred_check
      _
    $region19: #{tpu_custom_call.1} parent=1 // pred_check_branch
      %41 = sbr.rel (0) target = $region21
    $region20: #{tpu_custom_call.1} parent=1 // pred_region
      %42 = dma.done [#allocation6], 512
    $region21: #{tpu_custom_call.1} parent=1 // pred_fallthru
      _
    %v43 = vld [vmem:[#allocation2] sm:$0xff]
    %v44 = vld [vmem:[#allocation2 + $0x8] sm:$0xff]
    %v45 = vld [vmem:[#allocation5] sm:$0xff]
    %v46 = vld [vmem:[#allocation5 + $0x8] sm:$0xff]
    %v47 = vld [vmem:[#allocation5 + $0x10] sm:$0xff]
    %v48 = vld [vmem:[#allocation5 + $0x18] sm:$0xff]
    %v49 = vld [vmem:[%s2] sm:$0x1]
    %v51 = vlaneseq
    %v52 = vshrl.u32 %v51, 7
    %v53 = vsub.s32 0, %v52
    %v54 = vrot.slane %v49, %v53
    %vm56 = vcmask 261120
    %v58 = vsel %vm56, %v43, 0
    %v61 = vsel %vm56, %v44, 0
    %63 = vmatprep.subr.mxu0 0.0
    %64 = vmatpush1.msra.mxu0 %v45
    %65 = vmatprep.subr.mxu0 0.0
    %66 = vmatpush1.msra.mxu0 %v46
    %67 = vmatprep.subr.mxu0 0.0
    %68 = vmatpush1.msra.mxu0 %v47
    %69 = vmatprep.subr.mxu0 0.0
    %70 = vmatpush1.msra.mxu0 %v48
    %71 = vmatprep.subr.mxu0 0.0
    %72 = vmatpush1.msra.mxu0 0.0
    %73 = vmatprep.subr.mxu0 0.0
    %74 = vmatpush1.msra.mxu0 0.0
    %75 = vmatprep.subr.mxu0 0.0
    %76 = vmatpush1.msra.mxu0 0.0
    %77 = vmatprep.subr.mxu0 0.0
    %78 = vmatpush1.msra.mxu0 0.0
    %79 = vmatprep.subr.mxu0 0.0
    %80 = vmatpush1.msra.mxu0 0.0
    %81 = vmatprep.subr.mxu0 0.0
    %82 = vmatpush1.msra.mxu0 0.0
    %83 = vmatprep.subr.mxu0 0.0
    %84 = vmatpush1.msra.mxu0 0.0
    %85 = vmatprep.subr.mxu0 0.0
    %86 = vmatpush1.msra.mxu0 0.0
    %87 = vmatprep.subr.mxu0 0.0
    %88 = vmatpush1.msra.mxu0 0.0
    %89 = vmatprep.subr.mxu0 0.0
    %90 = vmatpush1.msra.mxu0 0.0
    %91 = vmatprep.subr.mxu0 0.0
    %92 = vmatpush1.msra.mxu0 0.0
    %93 = vmatprep.subr.mxu0 0.0
    %94 = vmatpush1.msra.mxu0 0.0
    %95 = vmatprep.subr.mxu0 0.0
    %96 = vmatpush1.msra.mxu0 0.0
    %97 = vmatprep.subr.mxu0 0.0
    %98 = vmatpush1.msra.mxu0 0.0
    %99 = vmatprep.subr.mxu0 0.0
    %100 = vmatpush1.msra.mxu0 0.0
    %101 = vmatprep.subr.mxu0 0.0
    %102 = vmatpush1.msra.mxu0 0.0
    %103 = vmatprep.subr.mxu0 0.0
    %104 = vmatpush1.msra.mxu0 0.0
    %105 = vmatprep.subr.mxu0 0.0
    %106 = vmatpush1.msra.mxu0 0.0
    %107 = vmatprep.subr.mxu0 0.0
    %108 = vmatpush1.msra.mxu0 0.0
    %109 = vmatprep.subr.mxu0 0.0
    %110 = vmatpush1.msra.mxu0 0.0
    %111 = vmatprep.subr.mxu0 0.0
    %112 = vmatpush1.msra.mxu0 0.0
    %113 = vmatprep.subr.mxu0 0.0
    %114 = vmatpush1.msra.mxu0 0.0
    %115 = vmatprep.subr.mxu0 0.0
    %116 = vmatpush1.msra.mxu0 0.0
    %117 = vmatprep.subr.mxu0 0.0
    %118 = vmatpush1.msra.mxu0 0.0
    %119 = vmatprep.subr.mxu0 0.0
    %120 = vmatpush1.msra.mxu0 0.0
    %121 = vmatprep.subr.mxu0 0.0
    %122 = vmatpush1.msra.mxu0 0.0
    %123 = vmatprep.subr.mxu0 0.0
    %124 = vmatpush1.msra.mxu0 0.0
    %125 = vmatprep.subr.mxu0 0.0
    %126 = vmatpush1.msra.mxu0 0.0
    %127 = vmatprep.mubr.f32.mxu0 0.0
    %128 = vmatmul.mubr.f32.gmra.mrb[0].mxu0 %v58
    %v129 = vpop.f32.mrb[0].mxu0
    %v130 = vadd.f32 %v54, %v129
    %v131 = vpop.f32.mrb[0].mxu0
    %132 = vmatprep.mubr.f32.mxu0 0.0
    %133 = vmatmul.mubr.f32.gmra.mrb[0].mxu0 %v61
    %v134 = vpop.f32.mrb[0].mxu0
    %v135 = vadd.f32 %v54, %v134
    %v136 = vpop.f32.mrb[0].mxu0
    %137 = vdwg.mxu0
    %138 = vst.msk [vmem:[#allocation7] sm:$0xff] %vm56, %v130
    %139 = vst.msk [vmem:[#allocation7 + $0x8] sm:$0xff] %vm56, %v135
    // Predicated region
    $region22: #{tpu_custom_call.1} parent=1 // pred_check
      _
    $region23: #{tpu_custom_call.1} parent=1 // pred_check_branch
      %141 = sbr.rel (0) target = $region25
    $region24: #{tpu_custom_call.1} parent=1 // pred_region
      %s143 = ssub.s32 256, 256
      %144 = vsyncadd [#allocation4], %s143
      %s145 = sshll.u32 [#allocation7], 4
      %s146 = int_to_ptr.vmem [resolvable:$true] %s145
      %151 = dma.vmem_to_hbm [thread:$0]  %s146, 256, %s3, [#allocation4], 128, 128, 8
    $region25: #{tpu_custom_call.1} parent=1 // pred_fallthru
      _
    // Predicated region
    $region26: #{tpu_custom_call.1} parent=1 // pred_check
      _
    $region27: #{tpu_custom_call.1} parent=1 // pred_check_branch
      %153 = sbr.rel (0) target = $region29
    $region28: #{tpu_custom_call.1} parent=1 // pred_region
      %154 = dma.done [#allocation4], 256
    $region29: #{tpu_custom_call.1} parent=1 // pred_fallthru
      _
    %155 = vsyncpa [#allocation3], 1
    %156 = vsyncpa [#allocation6], 1
    %157 = vsyncpa [#allocation4], 1

</llo_original>
